<compile_context>
chip_gen: v5e
topology: v5e:2x2
jax: 0.10.0
libtpu: 0.0.40
codegen_flags: <defaults>
</compile_context>

<pallas_src>
import functools

import jax
import jax.numpy as jnp
from jax.experimental import pallas as pl
from jax.experimental.pallas import tpu as pltpu


def _masked_conv1d_kernel(x_ref, halo_ref, w_ref, b_ref, m_ref, o_ref,
                          *, K, pad, cin, cout, compute_dtype):
    # x_ref   : (1, Cin, tT)             input time-tile (time on lanes)
    # halo_ref: (1, 1, Cin, max(2p,1))   [left pad cols | right pad cols]
    # w_ref   : (K, Cout, Cin)           weight, tap-major leading axis
    # b_ref   : (Cout, 1)                bias (f32)
    # m_ref   : (1, Cin, tT)             bool / int8 input-channel mask
    # o_ref   : (1, Cout, tT)            masked conv output
    x = x_ref[0]                                   # (Cin, tT)
    halo = halo_ref[0, 0]                          # (Cin, max(2*pad, 1))
    tT = x.shape[1]

    # Cast once per tile so per-tap shifted copies move bf16, not f32.
    xc = x.astype(compute_dtype)
    hc = halo.astype(compute_dtype)

    # Per-tap accumulate on the MXU (static unroll, K is small & odd).
    # No materialized (K*Cin, tT) im2col buffer.
    acc = None
    for k in range(K):
        d = k - pad
        if d < 0:
            tap = jnp.concatenate([hc[:, pad + d:pad], xc[:, :tT + d]], axis=1)
        elif d == 0:
            tap = xc
        else:
            tap = jnp.concatenate([xc[:, d:], hc[:, pad:pad + d]], axis=1)
        part = jnp.dot(w_ref[k], tap, preferred_element_type=jnp.float32)  # (Cout, tT)
        acc = part if acc is None else acc + part

    acc = acc + b_ref[...]                         # (Cout, 1) broadcast over lanes

    # Expand the Cin-channel mask to Cout channels without concat/copies.
    mv = m_ref[0]                                  # (Cin, tT)
    m = mv if mv.dtype == jnp.bool_ else (mv != 0)
    if cin < cout:
        n = cout // cin
        acc = jnp.where(m[None, :, :], acc.reshape(n, cin, tT), 0.0).reshape(cout, tT)
    elif cin > cout:
        acc = jnp.where(m[:cout, :], acc, 0.0)
    else:
        acc = jnp.where(m, acc, 0.0)

    # Single fused store: bias + mask + downcast -> one vst stream.
    o_ref[0] = acc.astype(o_ref.dtype)


def _round_up(n, m):
    return ((n + m - 1) // m) * m


def _pick_time_tile(T, target):
    """Return (tT, Tp): tT is the full T (short sequences) or a multiple of 128
    dividing the padded length Tp = round_up(T, 128)."""
    if T <= 128:
        return T, T
    Tp = _round_up(T, 128)
    target = max(128, min(int(target), Tp))
    best = 128
    t = 128
    while t <= target:
        if Tp % t == 0:
            best = t
        t += 128
    return best, Tp


def _default_time_tile(cin, cout, x_bytes, m_bytes):
    """Generation-aware target tile: keep double-buffered streams + in-kernel
    temporaries well under the available VMEM (64 MiB on v7x, 128 MiB v5e/v6e)."""
    try:
        vmem_cap = int(pltpu.get_tpu_info().vmem_capacity_bytes)
    except Exception:
        vmem_cap = 64 * 1024 * 1024
    budget = vmem_cap // 3
    per_col = 2 * (cin * x_bytes + cin * m_bytes + cout * x_bytes)  # dbl-buffered streams
    per_col += 8 * cout + 4 * cin                                   # f32 acc/epilogue + tap temp
    tT = budget // max(per_col, 1)
    return int(max(128, min(1024, (tT // 128) * 128)))


def _build_halo(x, tT, pad):
    """Boundary columns for each time tile: (B, nT, Cin, max(2*pad, 1))."""
    # TODO(synk): pack halos lane-dense / manual overlapping-window DMA if the
    # per-step tiny halo DMA ever shows up in a profile (second-order for small pad).
    B, Cin, T = x.shape
    nT = T // tT
    if pad == 0:
        return jnp.zeros((B, nT, Cin, 1), x.dtype)
    tiles = x.reshape(B, Cin, nT, tT)
    zeros = jnp.zeros((B, Cin, 1, pad), x.dtype)
    left = jnp.concatenate([zeros, tiles[:, :, :nT - 1, tT - pad:]], axis=2)
    right = jnp.concatenate([tiles[:, :, 1:, :pad], zeros], axis=2)
    halo = jnp.concatenate([left, right], axis=3)        # (B, Cin, nT, 2*pad)
    return jnp.transpose(halo, (0, 2, 1, 3))             # (B, nT, Cin, 2*pad)


def masked_conv1d(x, mask, weight, bias, *, stride=1, time_tile=None,
                  use_bf16_matmul=True):
    """Pallas implementation of MaskedConv1D.forward (stride=1, groups=1, dilation=1).

    x      : (B, C_in, T)  float
    mask   : (B, C_in, T)  bool / integer 0-1
    weight : (C_out, C_in, K)   (torch Conv1d layout)
    bias   : (C_out,)
    returns (out_conv (B, C_out, T), out_mask (B, C_out, T) bool)
    """
    B, Cin, T = x.shape
    Cout, Cin_w, K = weight.shape
    assert Cin_w == Cin and K % 2 == 1
    assert T % stride == 0
    # TODO(synk): stride > 1 path (F.interpolate 'nearest' mask resize) not implemented.
    assert stride == 1
    if Cin < Cout:
        assert Cout % Cin == 0, "out_channels must be a multiple of in_channels"
    pad = K // 2

    # Mask stream: keep native byte-backed dtypes (bool/int8/uint8) as-is;
    # only downcast wide integer/float masks.
    if mask.dtype in (jnp.bool_, jnp.int8, jnp.uint8):
        mask_in = mask
    else:
        mask_in = (mask != 0).astype(jnp.int8)

    out_dtype = x.dtype
    x_bytes = jnp.dtype(x.dtype).itemsize
    m_bytes = jnp.dtype(mask_in.dtype).itemsize
    out_bytes = jnp.dtype(out_dtype).itemsize
    compute_dtype = jnp.bfloat16 if use_bf16_matmul else x.dtype
    w_bytes = jnp.dtype(compute_dtype).itemsize

    # ---- time tiling (VMEM-aware; pad T to a 128 multiple when needed) ----
    if time_tile is None:
        time_tile = _default_time_tile(Cin, Cout, x_bytes, m_bytes)
    tT, Tp = _pick_time_tile(T, time_tile)
    nT = Tp // tT
    if Tp != T:
        x_p = jnp.pad(x, ((0, 0), (0, 0), (0, Tp - T)))
        mask_p = jnp.pad(mask_in, ((0, 0), (0, 0), (0, Tp - T)))
    else:
        x_p, mask_p = x, mask_in

    # Tiny side inputs (no full-size transposes / pads beyond the optional tail pad).
    w2 = jnp.transpose(weight, (2, 0, 1)).astype(compute_dtype)   # (K, Cout, Cin)
    b2 = bias.reshape(Cout, 1).astype(jnp.float32)
    halo = _build_halo(x_p, tT, pad)                              # (B, nT, Cin, Hw)
    Hw = halo.shape[-1]

    # Explicit VMEM budget: double-buffered streams + resident weights + temps.
    stream = 2 * (Cin * tT * x_bytes + Cin * tT * m_bytes
                  + Cin * Hw * x_bytes + Cout * tT * out_bytes)
    resident = 2 * (K * Cout * Cin * w_bytes + Cout * 4)
    temps = 2 * Cout * tT * 4 + Cin * tT * (w_bytes + x_bytes)
    vmem_limit = int(min(max(stream + resident + temps + (4 << 20), 32 << 20),
                         64 << 20))

    cost = pl.CostEstimate(
        flops=2 * B * T * K * Cin * Cout,
        transcendentals=0,
        bytes_accessed=int(x.size * x_bytes + mask.size * m_bytes
                           + weight.size * w_bytes + bias.size * 4
                           + B * Cout * T * out_bytes))

    grid_spec = pltpu.PrefetchScalarGridSpec(
        num_scalar_prefetch=0,
        grid=(B, nT),
        in_specs=[
            pl.BlockSpec((1, Cin, tT), lambda b, j: (b, 0, j)),        # x tile
            pl.BlockSpec((1, 1, Cin, Hw), lambda b, j: (b, j, 0, 0)),  # halo cols
            pl.BlockSpec((K, Cout, Cin), lambda b, j: (0, 0, 0)),      # weight (resident)
            pl.BlockSpec((Cout, 1), lambda b, j: (0, 0)),              # bias   (resident)
            pl.BlockSpec((1, Cin, tT), lambda b, j: (b, 0, j)),        # mask tile
        ],
        out_specs=pl.BlockSpec((1, Cout, tT), lambda b, j: (b, 0, j)),
    )
    # TODO(synk): if a profile shows exposed DMA on the x/mask streams at small
    # channel counts, add pipeline_mode=pl.Buffered(3) to those two BlockSpecs.

    out_conv = pl.pallas_call(
        functools.partial(_masked_conv1d_kernel, K=K, pad=pad,
                          cin=Cin, cout=Cout, compute_dtype=compute_dtype),
        out_shape=jax.ShapeDtypeStruct((B, Cout, Tp), out_dtype),
        grid_spec=grid_spec,
        compiler_params=pltpu.CompilerParams(
            dimension_semantics=("parallel", "parallel"),
            vmem_limit_bytes=vmem_limit),
        cost_estimate=cost,
    )(x_p, halo, w2, b2, mask_p)

    if Tp != T:
        out_conv = out_conv[..., :T]

    # out_mask channel handling (matches the torch repeat / slice semantics).
    mask_b = mask.astype(bool)
    if Cin < Cout:
        out_mask = jnp.tile(mask_b, (1, Cout // Cin, 1))
    elif Cin > Cout:
        out_mask = mask_b[:, :Cout, :]
    else:
        out_mask = mask_b
    return out_conv, out_mask


def _reference(x, mask, weight, bias, stride=1):
    Cout, Cin, K = weight.shape
    pad = K // 2
    conv = jax.lax.conv_general_dilated(
        x, weight, window_strides=(stride,), padding=[(pad, pad)],
        dimension_numbers=("NCH", "OIH", "NCH")) + bias[None, :, None]
    if Cin < Cout:
        mref = jnp.tile(mask.astype(bool), (1, Cout // Cin, 1))
    elif Cin > Cout:
        mref = mask.astype(bool)[:, :Cout, :]
    else:
        mref = mask.astype(bool)
    return conv * mref.astype(x.dtype), mref


if __name__ == "__main__":
    key = jax.random.PRNGKey(0)

    # --- test 1: module-like small shapes, Cin < Cout, single time tile ---
    B, Cin, Cout, T, K = 2, 4, 8, 16, 3
    k1, k2, k3, key = jax.random.split(key, 4)
    x = jax.random.normal(k1, (B, Cin, T), dtype=jnp.float32)
    mask = jax.random.uniform(k2, (B, Cin, T)) > 0.3
    weight = 0.1 * jax.random.normal(k3, (Cout, Cin, K), dtype=jnp.float32)
    bias = jnp.zeros((Cout,), dtype=jnp.float32)          # module init: constant 0
    ref, mref = _reference(x, mask, weight, bias)

    # exact path (f32 MXU operands)
    oc, om = masked_conv1d(x, mask, weight, bias, use_bf16_matmul=False)
    oc, om = jax.block_until_ready(oc), jax.block_until_ready(om)
    assert oc.shape == (B, Cout, T) and om.shape == (B, Cout, T)
    assert om.dtype == jnp.bool_
    assert jnp.allclose(oc, ref, atol=1e-4, rtol=1e-4)
    assert bool(jnp.all(om == mref))

    # fast path (bf16 MXU operands, f32 accumulation)
    oc, om = masked_conv1d(x, mask, weight, bias)
    oc = jax.block_until_ready(oc)
    assert jnp.allclose(oc, ref, atol=2e-2, rtol=2e-2)
    assert bool(jnp.all(om == mref))

    # --- test 2: multi-tile time (halo), Cin > Cout, K=5, nonzero bias ---
    B, Cin, Cout, T, K = 2, 8, 4, 256, 5
    k1, k2, k3, k4 = jax.random.split(key, 4)
    x = jax.random.normal(k1, (B, Cin, T), dtype=jnp.float32)
    mask = jax.random.uniform(k2, (B, Cin, T)) > 0.3
    weight = 0.1 * jax.random.normal(k3, (Cout, Cin, K), dtype=jnp.float32)
    bias = 0.1 * jax.random.normal(k4, (Cout,), dtype=jnp.float32)
    ref, mref = _reference(x, mask, weight, bias)

    oc, om = masked_conv1d(x, mask, weight, bias, time_tile=128,
                           use_bf16_matmul=False)          # nT = 2, exact
    oc = jax.block_until_ready(oc)
    assert jnp.allclose(oc, ref, atol=1e-4, rtol=1e-4)
    assert bool(jnp.all(om == mref))

    oc, om = masked_conv1d(x, mask, weight, bias, time_tile=128)  # bf16 fast path
    oc = jax.block_until_ready(oc)
    assert jnp.allclose(oc, ref, atol=2e-2, rtol=2e-2)

    # --- test 3: T not a multiple of 128 -> padded-tail multi-tile path ---
    B, Cin, Cout, T, K = 1, 8, 8, 200, 3
    k1, k2, k3, key = jax.random.split(key, 4)
    x = jax.random.normal(k1, (B, Cin, T), dtype=jnp.float32)
    mask = jax.random.uniform(k2, (B, Cin, T)) > 0.3
    weight = 0.1 * jax.random.normal(k3, (Cout, Cin, K), dtype=jnp.float32)
    bias = jnp.zeros((Cout,), dtype=jnp.float32)
    ref, mref = _reference(x, mask, weight, bias)

    oc, om = masked_conv1d(x, mask, weight, bias, time_tile=128,
                           use_bf16_matmul=False)          # Tp = 256, nT = 2
    oc = jax.block_until_ready(oc)
    assert oc.shape == (B, Cout, T)
    assert jnp.allclose(oc, ref, atol=1e-4, rtol=1e-4)
    assert bool(jnp.all(om == mref))

    print("KERNEL_OK")
</pallas_src>

<mosaic_0001>
module attributes {stable_mosaic.version = 11 : i64} {
  func.func @_masked_conv1d_kernel(%arg0: i32, %arg1: i32, %arg2: memref<1x4x16xf32, #tpu.memory_space<vmem>>, %arg3: memref<1x1x4x2xf32, #tpu.memory_space<vmem>>, %arg4: memref<3x8x4xf32, #tpu.memory_space<vmem>>, %arg5: memref<8x1xf32, #tpu.memory_space<vmem>>, %arg6: memref<1x4x16xi32, #tpu.memory_space<vmem>>, %arg7: memref<1x8x16xf32, #tpu.memory_space<vmem>>) attributes {dimension_semantics = [#tpu.dimension_semantics<parallel>, #tpu.dimension_semantics<parallel>], iteration_bounds = array<i64: 2, 1>, scalar_prefetch = 0 : i64, scratch_operands = 0 : i64, tpu.core_type = #tpu.core_type<tc>, window_params = [{transform_indices = @transform_0, window_bounds = array<i64: 1, 4, 16>}, {transform_indices = @transform_1, window_bounds = array<i64: 1, 1, 4, 2>}, {pipeline_mode = #tpu.pipeline_mode<synchronous>, transform_indices = @transform_2, window_bounds = array<i64: 3, 8, 4>}, {pipeline_mode = #tpu.pipeline_mode<synchronous>, transform_indices = @transform_3, window_bounds = array<i64: 8, 1>}, {transform_indices = @transform_4, window_bounds = array<i64: 1, 4, 16>}, {transform_indices = @transform_5, window_bounds = array<i64: 1, 8, 16>}]} {
    %c0 = arith.constant 0 : index
    %c0_0 = arith.constant 0 : index
    %c0_1 = arith.constant 0 : index
    %0 = vector.load %arg2[%c0, %c0_0, %c0_1] : memref<1x4x16xf32, #tpu.memory_space<vmem>>, vector<1x4x16xf32>
    %1 = vector.shape_cast %0 : vector<1x4x16xf32> to vector<4x16xf32>
    %c0_2 = arith.constant 0 : index
    %c0_3 = arith.constant 0 : index
    %c0_4 = arith.constant 0 : index
    %c0_5 = arith.constant 0 : index
    %2 = vector.load %arg3[%c0_2, %c0_3, %c0_4, %c0_5] : memref<1x1x4x2xf32, #tpu.memory_space<vmem>>, vector<1x1x4x2xf32>
    %3 = vector.shape_cast %2 : vector<1x1x4x2xf32> to vector<4x2xf32>
    %4 = vector.extract_strided_slice %3 {offsets = [0, 0], sizes = [4, 1], strides = [1, 1]} : vector<4x2xf32> to vector<4x1xf32>
    %5 = vector.extract_strided_slice %1 {offsets = [0, 0], sizes = [4, 15], strides = [1, 1]} : vector<4x16xf32> to vector<4x15xf32>
    %6 = tpu.concatenate %4, %5 in 1 : vector<4x1xf32>, vector<4x15xf32> -> vector<4x16xf32>
    %c0_6 = arith.constant 0 : index
    %c0_7 = arith.constant 0 : index
    %c0_8 = arith.constant 0 : index
    %7 = vector.load %arg4[%c0_6, %c0_7, %c0_8] : memref<3x8x4xf32, #tpu.memory_space<vmem>>, vector<1x8x4xf32>
    %8 = vector.shape_cast %7 : vector<1x8x4xf32> to vector<8x4xf32>
    %cst = arith.constant dense<0.000000e+00> : vector<8x16xf32>
    %9 = tpu.matmul %8, %6, %cst {dimension_numbers = #tpu.dot_dimension_numbers<[1], [0], [0], [1], [0, 0, 1, 1], [], []>} : vector<8x4xf32>, vector<4x16xf32>, vector<8x16xf32> -> vector<8x16xf32>
    %c1 = arith.constant 1 : index
    %c0_9 = arith.constant 0 : index
    %c0_10 = arith.constant 0 : index
    %10 = vector.load %arg4[%c1, %c0_9, %c0_10] : memref<3x8x4xf32, #tpu.memory_space<vmem>>, vector<1x8x4xf32>
    %11 = vector.shape_cast %10 : vector<1x8x4xf32> to vector<8x4xf32>
    %cst_11 = arith.constant dense<0.000000e+00> : vector<8x16xf32>
    %12 = tpu.matmul %11, %1, %cst_11 {dimension_numbers = #tpu.dot_dimension_numbers<[1], [0], [0], [1], [0, 0, 1, 1], [], []>} : vector<8x4xf32>, vector<4x16xf32>, vector<8x16xf32> -> vector<8x16xf32>
    %13 = arith.addf %9, %12 : vector<8x16xf32>
    %14 = vector.extract_strided_slice %1 {offsets = [0, 1], sizes = [4, 15], strides = [1, 1]} : vector<4x16xf32> to vector<4x15xf32>
    %15 = vector.extract_strided_slice %3 {offsets = [0, 1], sizes = [4, 1], strides = [1, 1]} : vector<4x2xf32> to vector<4x1xf32>
    %16 = tpu.concatenate %14, %15 in 1 : vector<4x15xf32>, vector<4x1xf32> -> vector<4x16xf32>
    %c2 = arith.constant 2 : index
    %c0_12 = arith.constant 0 : index
    %c0_13 = arith.constant 0 : index
    %17 = vector.load %arg4[%c2, %c0_12, %c0_13] : memref<3x8x4xf32, #tpu.memory_space<vmem>>, vector<1x8x4xf32>
    %18 = vector.shape_cast %17 : vector<1x8x4xf32> to vector<8x4xf32>
    %cst_14 = arith.constant dense<0.000000e+00> : vector<8x16xf32>
    %19 = tpu.matmul %18, %16, %cst_14 {dimension_numbers = #tpu.dot_dimension_numbers<[1], [0], [0], [1], [0, 0, 1, 1], [], []>} : vector<8x4xf32>, vector<4x16xf32>, vector<8x16xf32> -> vector<8x16xf32>
    %20 = arith.addf %13, %19 : vector<8x16xf32>
    %c0_15 = arith.constant 0 : index
    %c0_16 = arith.constant 0 : index
    %21 = vector.load %arg5[%c0_15, %c0_16] : memref<8x1xf32, #tpu.memory_space<vmem>>, vector<8x1xf32>
    %22 = vector.broadcast %21 : vector<8x1xf32> to vector<8x16xf32>
    %23 = arith.addf %20, %22 : vector<8x16xf32>
    %c0_17 = arith.constant 0 : index
    %c0_18 = arith.constant 0 : index
    %c0_19 = arith.constant 0 : index
    %24 = vector.load %arg6[%c0_17, %c0_18, %c0_19] : memref<1x4x16xi32, #tpu.memory_space<vmem>>, vector<1x4x16xi32>
    %25 = vector.shape_cast %24 : vector<1x4x16xi32> to vector<4x16xi32>
    %cst_20 = arith.constant dense<0> : vector<4x16xi32>
    %26 = arith.cmpi ne, %25, %cst_20 : vector<4x16xi32>
    %27 = vector.shape_cast %26 : vector<4x16xi1> to vector<1x4x16xi1>
    %28 = vector.shape_cast %23 : vector<8x16xf32> to vector<2x4x16xf32>
    %cst_21 = arith.constant 0.000000e+00 : f32
    %29 = vector.shape_cast %27 : vector<1x4x16xi1> to vector<1x4x16xi1>
    %30 = vector.broadcast %29 : vector<1x4x16xi1> to vector<2x4x16xi1>
    %31 = vector.broadcast %cst_21 : f32 to vector<2x4x16xf32>
    %32 = arith.select %30, %28, %31 : vector<2x4x16xi1>, vector<2x4x16xf32>
    %33 = vector.shape_cast %32 : vector<2x4x16xf32> to vector<8x16xf32>
    %c0_22 = arith.constant 0 : index
    %c0_23 = arith.constant 0 : index
    %c0_24 = arith.constant 0 : index
    %34 = vector.load %arg7[%c0_22, %c0_23, %c0_24] : memref<1x8x16xf32, #tpu.memory_space<vmem>>, vector<1x8x16xf32>
    %35 = vector.shape_cast %34 : vector<1x8x16xf32> to vector<8x16xf32>
    %36 = vector.shape_cast %33 : vector<8x16xf32> to vector<1x8x16xf32>
    tpu.vector_store %arg7[%c0_22, %c0_23, %c0_24], %36 {strides = array<i32>} : memref<1x8x16xf32, #tpu.memory_space<vmem>>, vector<1x8x16xf32>,
    return
  }
  func.func @transform_0(%arg0: i32, %arg1: i32) -> (i32, i32, i32) {
    %c0_i32 = arith.constant 0 : i32
    %c0_i32_0 = arith.constant 0 : i32
    return %arg0, %c0_i32, %arg1 : i32, i32, i32
  }
  func.func @transform_1(%arg0: i32, %arg1: i32) -> (i32, i32, i32, i32) {
    %c0_i32 = arith.constant 0 : i32
    %c0_i32_0 = arith.constant 0 : i32
    %c0_i32_1 = arith.constant 0 : i32
    return %arg0, %arg1, %c0_i32, %c0_i32_0 : i32, i32, i32, i32
  }
  func.func @transform_2(%arg0: i32, %arg1: i32) -> (i32, i32, i32) {
    %c0_i32 = arith.constant 0 : i32
    %c0_i32_0 = arith.constant 0 : i32
    %c0_i32_1 = arith.constant 0 : i32
    %c0_i32_2 = arith.constant 0 : i32
    return %c0_i32, %c0_i32_0, %c0_i32_1 : i32, i32, i32
  }
  func.func @transform_3(%arg0: i32, %arg1: i32) -> (i32, i32) {
    %c0_i32 = arith.constant 0 : i32
    %c0_i32_0 = arith.constant 0 : i32
    %c0_i32_1 = arith.constant 0 : i32
    return %c0_i32, %c0_i32_0 : i32, i32
  }
  func.func @transform_4(%arg0: i32, %arg1: i32) -> (i32, i32, i32) {
    %c0_i32 = arith.constant 0 : i32
    %c0_i32_0 = arith.constant 0 : i32
    return %arg0, %c0_i32, %arg1 : i32, i32, i32
  }
  func.func @transform_5(%arg0: i32, %arg1: i32) -> (i32, i32, i32) {
    %c0_i32 = arith.constant 0 : i32
    %c0_i32_0 = arith.constant 0 : i32
    return %arg0, %c0_i32, %arg1 : i32, i32, i32
  }
}

</mosaic_0001>

<llo_original>
// kernel: tpu_custom_call.1
$region0: #{tpu_custom_call.1}
  #allocation0 [shape = 'u32[]', space=smem, size = 0x4, offset = 0x4, fixed_abs, tag = 'smem constant byte address 0x4 - core index']
  #allocation1 [shape = 'u32[72,128]{1,0:T(1,128)}', space=vmem, size = 0x9000, scoped, tag = 'internal scratch']
  %s0 = inlined_call_operand.vmem [shape: f32[2,4,16], index: 0, kind: input, shape index: {}]
  %s1 = inlined_call_operand.vmem [shape: f32[2,1,4,2], index: 1, kind: input, shape index: {}]
  %s2 = inlined_call_operand.vmem [shape: f32[3,8,4], index: 2, kind: input, shape index: {}]
  %s3 = inlined_call_operand.vmem [shape: f32[8,1], index: 3, kind: input, shape index: {}]
  %s4 = inlined_call_operand.vmem [shape: s32[2,4,16], index: 4, kind: input, shape index: {}]
  %s5 = inlined_call_operand.hbm [shape: f32[2,8,16], index: 5, kind: output, shape index: {}]
  %s6 = sld [smem:[#allocation0]]
  $region53: #{tpu_custom_call.1} parent=0
    _
  %s8 = ssub.s32 1, %s6
  %s9 = scalar_select 0, %s8, %s6
  $region1: #{tpu_custom_call.1} parent=0
    #allocation2 [shape = 'u8[8192]{0}', space=vmem, size = 0x2000, scoped, tag = 'output window, operand 0']
    #allocation3 [shape = 's32[2]{0}', space=sflag, size = 0x8, scoped, tag = 'scoped memory for tpu_custom_call.1']
    %10 = vsyncpa [#allocation3], 0
    %s11 = scalar_lea.sflag [#allocation3], 1
    %12 = vsyncpa %s11, 0
    loop: start=0, step=1, limit=4
    $region2: #{tpu_custom_call.1} parent=1 // loop_pre_header
      _
    $region3: #{tpu_custom_call.1} parent=1 // loop_header
      %s14 = sphi 0, %s18
      %p15 = scmp.ge.s32.totalorder %s14, 4
      %s21 = sphi 0, %s33
      %s22 = sphi 0, %s29
      %s23 = sphi 0, %s21
      %s24 = sphi 0, %s22
      %s25 = sphi 0, %s23
      %s26 = sphi 0, %s24
      %s38 = sphi 0, %s40
      %s41 = sphi 0, %s38
      %s42 = sphi 0, %s41
      %s58 = sphi 0, %s42
      %s66 = sphi 0, %s68
      %s69 = sphi 0, %s66
      %s70 = sphi 0, %s69
      %s86 = sphi 0, %s70
      %s90 = sphi 0, %s90
      %s92 = sphi 0, %s90
      %s93 = sphi 0, %s92
      %s107 = sphi 0, %s93
      %s111 = sphi 0, %s111
      %s113 = sphi 0, %s111
      %s114 = sphi 0, %s113
      %s128 = sphi 0, %s114
      %s136 = sphi 0, %s138
      %s139 = sphi 0, %s136
      %s140 = sphi 0, %s139
      %s156 = sphi 0, %s140
      %s164 = sphi 0, %s166
      %s167 = sphi 0, %s164
      %s168 = sphi 0, %s167
      %s184 = sphi 0, %s168
    $region4: #{tpu_custom_call.1} parent=1 // loop_header_branch
      %17 = sbr.rel (%p15) target = $region8
    $region5: #{tpu_custom_call.1} parent=1 // loop_body
      %s19 = ssub.s32 %s14, 1
      %s20 = ssub.s32 %s14, 2
      %s27 = sadd.s32 1, %s22
      %p28 = scmp.ge.s32.totalorder %s27, 1
      %s29 = scalar_select %p28, 0, %s27
      %s30 = sadd.s32 1, %s21
      %s31 = scalar_select %p28, %s30, %s21
      %p32 = scmp.ge.s32.totalorder %s31, 2
      %s33 = scalar_select %p32, 0, %s31
      %s34 = ssub.s32 %s21, %s33
      %s35 = ssub.s32 %s22, %s29
      %s36 = sor.u32 %s34, %s35
      %p37 = scmp.eq.s32.totalorder %s36, 0
      %s39 = sadd.s32 %s38, 1
      %s40 = scalar_select %p37, %s38, %s39
      %p43 = pneg %p37
      %p44 = scmp.eq.s32.totalorder %s14, 1
      %p45 = por %p43, %p44
      %p46 = scmp.ne.s32.totalorder %s38, %s41
      %p47 = scmp.eq.s32.totalorder %s14, 0
      %p48 = por %p46, %p47
      %p49 = scmp.ne.s32.totalorder %s38, %s41
      %p50 = scmp.eq.s32.totalorder %s19, 1
      %p51 = por %p49, %p50
      %p52 = scmp.ne.s32.totalorder %s41, %s42
      %p53 = scmp.eq.s32.totalorder %s19, 0
      %p54 = por %p52, %p53
      %p55 = scmp.ne.s32.totalorder %s41, %s42
      %p56 = scmp.eq.s32.totalorder %s20, 1
      %p57 = por %p55, %p56
      %p59 = scmp.ne.s32.totalorder %s42, %s58
      %p60 = scmp.eq.s32.totalorder %s20, 0
      %p61 = por %p59, %p60
      %s62 = ssub.s32 %s21, %s33
      %s63 = ssub.s32 %s22, %s29
      %s64 = sor.u32 %s62, %s63
      %p65 = scmp.eq.s32.totalorder %s64, 0
      %s67 = sadd.s32 %s66, 1
      %s68 = scalar_select %p65, %s66, %s67
      %p71 = pneg %p65
      %p72 = scmp.eq.s32.totalorder %s14, 1
      %p73 = por %p71, %p72
      %p74 = scmp.ne.s32.totalorder %s66, %s69
      %p75 = scmp.eq.s32.totalorder %s14, 0
      %p76 = por %p74, %p75
      %p77 = scmp.ne.s32.totalorder %s66, %s69
      %p78 = scmp.eq.s32.totalorder %s19, 1
      %p79 = por %p77, %p78
      %p80 = scmp.ne.s32.totalorder %s69, %s70
      %p81 = scmp.eq.s32.totalorder %s19, 0
      %p82 = por %p80, %p81
      %p83 = scmp.ne.s32.totalorder %s69, %s70
      %p84 = scmp.eq.s32.totalorder %s20, 1
      %p85 = por %p83, %p84
      %p87 = scmp.ne.s32.totalorder %s70, %s86
      %p88 = scmp.eq.s32.totalorder %s20, 0
      %p89 = por %p87, %p88
      %s91 = sadd.s32 %s90, 1
      %p94 = scmp.eq.s32.totalorder %s14, 1
      %p95 = scmp.ne.s32.totalorder %s90, %s92
      %p96 = scmp.eq.s32.totalorder %s14, 0
      %p97 = por %p95, %p96
      %p98 = scmp.ne.s32.totalorder %s90, %s92
      %p99 = scmp.eq.s32.totalorder %s19, 1
      %p100 = por %p98, %p99
      %p101 = scmp.ne.s32.totalorder %s92, %s93
      %p102 = scmp.eq.s32.totalorder %s19, 0
      %p103 = por %p101, %p102
      %p104 = scmp.ne.s32.totalorder %s92, %s93
      %p105 = scmp.eq.s32.totalorder %s20, 1
      %p106 = por %p104, %p105
      %p108 = scmp.ne.s32.totalorder %s93, %s107
      %p109 = scmp.eq.s32.totalorder %s20, 0
      %p110 = por %p108, %p109
      %s112 = sadd.s32 %s111, 1
      %p115 = scmp.eq.s32.totalorder %s14, 1
      %p116 = scmp.ne.s32.totalorder %s111, %s113
      %p117 = scmp.eq.s32.totalorder %s14, 0
      %p118 = por %p116, %p117
      %p119 = scmp.ne.s32.totalorder %s111, %s113
      %p120 = scmp.eq.s32.totalorder %s19, 1
      %p121 = por %p119, %p120
      %p122 = scmp.ne.s32.totalorder %s113, %s114
      %p123 = scmp.eq.s32.totalorder %s19, 0
      %p124 = por %p122, %p123
      %p125 = scmp.ne.s32.totalorder %s113, %s114
      %p126 = scmp.eq.s32.totalorder %s20, 1
      %p127 = por %p125, %p126
      %p129 = scmp.ne.s32.totalorder %s114, %s128
      %p130 = scmp.eq.s32.totalorder %s20, 0
      %p131 = por %p129, %p130
      %s132 = ssub.s32 %s21, %s33
      %s133 = ssub.s32 %s22, %s29
      %s134 = sor.u32 %s132, %s133
      %p135 = scmp.eq.s32.totalorder %s134, 0
      %s137 = sadd.s32 %s136, 1
      %s138 = scalar_select %p135, %s136, %s137
      %p141 = pneg %p135
      %p142 = scmp.eq.s32.totalorder %s14, 1
      %p143 = por %p141, %p142
      %p144 = scmp.ne.s32.totalorder %s136, %s139
      %p145 = scmp.eq.s32.totalorder %s14, 0
      %p146 = por %p144, %p145
      %p147 = scmp.ne.s32.totalorder %s136, %s139
      %p148 = scmp.eq.s32.totalorder %s19, 1
      %p149 = por %p147, %p148
      %p150 = scmp.ne.s32.totalorder %s139, %s140
      %p151 = scmp.eq.s32.totalorder %s19, 0
      %p152 = por %p150, %p151
      %p153 = scmp.ne.s32.totalorder %s139, %s140
      %p154 = scmp.eq.s32.totalorder %s20, 1
      %p155 = por %p153, %p154
      %p157 = scmp.ne.s32.totalorder %s140, %s156
      %p158 = scmp.eq.s32.totalorder %s20, 0
      %p159 = por %p157, %p158
      %s160 = ssub.s32 %s21, %s33
      %s161 = ssub.s32 %s22, %s29
      %s162 = sor.u32 %s160, %s161
      %p163 = scmp.eq.s32.totalorder %s162, 0
      %s165 = sadd.s32 %s164, 1
      %s166 = scalar_select %p163, %s164, %s165
      %p169 = pneg %p163
      %p170 = scmp.eq.s32.totalorder %s14, 1
      %p171 = por %p169, %p170
      %p172 = scmp.ne.s32.totalorder %s164, %s167
      %p173 = scmp.eq.s32.totalorder %s14, 0
      %p174 = por %p172, %p173
      %p175 = scmp.ne.s32.totalorder %s164, %s167
      %p176 = scmp.eq.s32.totalorder %s19, 1
      %p177 = por %p175, %p176
      %p178 = scmp.ne.s32.totalorder %s167, %s168
      %p179 = scmp.eq.s32.totalorder %s19, 0
      %p180 = por %p178, %p179
      %p181 = scmp.ne.s32.totalorder %s167, %s168
      %p182 = scmp.eq.s32.totalorder %s20, 1
      %p183 = por %p181, %p182
      %p185 = scmp.ne.s32.totalorder %s168, %s184
      %p186 = scmp.eq.s32.totalorder %s20, 0
      %p187 = por %p185, %p186
      %p188 = scmp.le.s32.totalorder 1, %s14
      %p189 = scmp.lt.s32.totalorder %s14, 3
      %p190 = pnand %p188, %p189
      %p191 = pneg %p190
      // Predicated region
      $region9: #{tpu_custom_call.1} parent=5 // pred_check
        _
      $region10: #{tpu_custom_call.1} parent=5 // pred_check_branch
        %193 = sbr.rel (%p190) target = $region12
      $region11: #{tpu_custom_call.1} parent=5 // pred_region
        %s194 = ssub.s32 %s14, 1
        // Predicated region
        $region13: #{tpu_custom_call.1} parent=11 // pred_check
          %p195 = pneg %p103
        $region14: #{tpu_custom_call.1} parent=11 // pred_check_branch
          %197 = sbr.rel (%p195) target = $region16
        $region15: #{tpu_custom_call.1} parent=11 // pred_region
          _
        $region16: #{tpu_custom_call.1} parent=11 // pred_fallthru
          _
        // Predicated region
        $region17: #{tpu_custom_call.1} parent=11 // pred_check
          %p198 = pneg %p124
        $region18: #{tpu_custom_call.1} parent=11 // pred_check_branch
          %200 = sbr.rel (%p198) target = $region20
        $region19: #{tpu_custom_call.1} parent=11 // pred_region
          _
        $region20: #{tpu_custom_call.1} parent=11 // pred_fallthru
          _
      $region12: #{tpu_custom_call.1} parent=5 // pred_fallthru
        _
      %p201 = scmp.lt.s32.totalorder %s14, 2
      // Predicated region
      $region21: #{tpu_custom_call.1} parent=5 // pred_check
        %p202 = pneg %p201
      $region22: #{tpu_custom_call.1} parent=5 // pred_check_branch
        %204 = sbr.rel (%p202) target = $region24
      $region23: #{tpu_custom_call.1} parent=5 // pred_region
        // Predicated region
        $region25: #{tpu_custom_call.1} parent=23 // pred_check
          %p205 = pneg %p48
        $region26: #{tpu_custom_call.1} parent=23 // pred_check_branch
          %207 = sbr.rel (%p205) target = $region28
        $region27: #{tpu_custom_call.1} parent=23 // pred_region
          %p208 = scmp.lt.s32.totalorder %s21, 1
          %s209 = scalar_select %p208, %s21, 1
          %p210 = scmp.lt.s32.totalorder %s22, 0
          %s211 = scalar_select %p210, %s22, 0
          %s212 = sadd.s32 %s211, %s209
          %s213 = smul.addr %s212, 4
          %s214 = scalar_lea.vmem %s0, %s213
        $region28: #{tpu_custom_call.1} parent=23 // pred_fallthru
          _
        // Predicated region
        $region29: #{tpu_custom_call.1} parent=23 // pred_check
          %p215 = pneg %p76
        $region30: #{tpu_custom_call.1} parent=23 // pred_check_branch
          %217 = sbr.rel (%p215) target = $region32
        $region31: #{tpu_custom_call.1} parent=23 // pred_region
          %p218 = scmp.lt.s32.totalorder %s21, 1
          %s219 = scalar_select %p218, %s21, 1
          %p220 = scmp.lt.s32.totalorder %s22, 0
          %s221 = scalar_select %p220, %s22, 0
          %s222 = sadd.s32 %s221, %s219
          %s223 = smul.addr %s222, 4
          %s224 = scalar_lea.vmem %s1, %s223
        $region32: #{tpu_custom_call.1} parent=23 // pred_fallthru
          _
        // Predicated region
        $region33: #{tpu_custom_call.1} parent=23 // pred_check
          %p225 = pneg %p146
        $region34: #{tpu_custom_call.1} parent=23 // pred_check_branch
          %227 = sbr.rel (%p225) target = $region36
        $region35: #{tpu_custom_call.1} parent=23 // pred_region
          %p228 = scmp.lt.s32.totalorder %s21, 1
          %s229 = scalar_select %p228, %s21, 1
          %p230 = scmp.lt.s32.totalorder %s22, 0
          %s231 = scalar_select %p230, %s22, 0
          %s232 = sadd.s32 %s231, %s229
          %s233 = smul.addr %s232, 4
          %s234 = scalar_lea.vmem %s4, %s233
        $region36: #{tpu_custom_call.1} parent=23 // pred_fallthru
          _
      $region24: #{tpu_custom_call.1} parent=5 // pred_fallthru
        _
      %p235 = scmp.le.s32.totalorder 1, %s14
      %p236 = scmp.lt.s32.totalorder %s14, 3
      %p237 = pnand %p235, %p236
      %p238 = pneg %p237
      // Predicated region
      $region37: #{tpu_custom_call.1} parent=5 // pred_check
        _
      $region38: #{tpu_custom_call.1} parent=5 // pred_check_branch
        %240 = sbr.rel (%p237) target = $region40
      $region39: #{tpu_custom_call.1} parent=5 // pred_region
        %s241 = ssub.s32 %s14, 1
        %p242 = scmp.lt.s32.totalorder %s23, 1
        %s243 = scalar_select %p242, %s23, 1
        %p244 = scmp.lt.s32.totalorder %s24, 0
        %s245 = scalar_select %p244, %s24, 0
        %s246 = sadd.s32 %s245, %s243
        %s247 = smul.addr %s246, 4
        %s248 = scalar_lea.vmem %s0, %s247
        %p249 = pneg %p54
        %p250 = pneg %p51
        %p251 = scmp.lt.s32.totalorder %s23, 1
        %s252 = scalar_select %p251, %s23, 1
        %p253 = scmp.lt.s32.totalorder %s24, 0
        %s254 = scalar_select %p253, %s24, 0
        %s255 = sadd.s32 %s254, %s252
        %s256 = smul.addr %s255, 4
        %s257 = scalar_lea.vmem %s1, %s256
        %p258 = pneg %p82
        %p259 = pneg %p79
        %p260 = pneg %p103
        %p261 = pneg %p100
        %p262 = pneg %p124
        %p263 = pneg %p121
        %p264 = scmp.lt.s32.totalorder %s23, 1
        %s265 = scalar_select %p264, %s23, 1
        %p266 = scmp.lt.s32.totalorder %s24, 0
        %s267 = scalar_select %p266, %s24, 0
        %s268 = sadd.s32 %s267, %s265
        %s269 = smul.addr %s268, 4
        %s270 = scalar_lea.vmem %s4, %s269
        %p271 = pneg %p152
        %p272 = pneg %p149
        %p273 = pneg %p180
        %p274 = pneg %p177
        %s275 = sand.u32 %s167, 1
        %s276 = scalar_lea.sflag [#allocation3], %s275
        %s277 = sand.u32 %s167, 1
        %s278 = smul.addr %s277, 8
        %s279 = scalar_lea.vmem [#allocation2], %s278
        %p280 = scmp.lt.s32.totalorder %s23, 1
        %s281 = scalar_select %p280, %s23, 1
        %p282 = scmp.lt.s32.totalorder %s24, 0
        %s283 = scalar_select %p282, %s24, 0
        %s284 = sadd.s32 %s283, %s281
        %s285 = smul.addr %s284, 4
        %s286 = scalar_lea.vmem %s0, %s285
        %p287 = scmp.lt.s32.totalorder %s23, 1
        %s288 = scalar_select %p287, %s23, 1
        %p289 = scmp.lt.s32.totalorder %s24, 0
        %s290 = scalar_select %p289, %s24, 0
        %s291 = sadd.s32 %s290, %s288
        %s292 = smul.addr %s291, 4
        %s293 = scalar_lea.vmem %s1, %s292
        %p294 = scmp.lt.s32.totalorder %s23, 1
        %s295 = scalar_select %p294, %s23, 1
        %p296 = scmp.lt.s32.totalorder %s24, 0
        %s297 = scalar_select %p296, %s24, 0
        %s298 = sadd.s32 %s297, %s295
        %s299 = smul.addr %s298, 4
        %s300 = scalar_lea.vmem %s4, %s299
        %v301 = vld [vmem:[%s286] sm:$0xf]
        %v302 = vld [vmem:[%s293] sm:$0xf]
        %304 = vrot.lane.b32.xlu0 %v301, 1
        %v305 = vpop.permute.xlu0 %304
        %vm307 = vcmask 7168
        %v308 = vsel %vm307, %v302, %v305
        %v309 = vld [vmem:[%s2] sm:$0xff]
        %s310 = scalar_lea.vmem %s2, 8
        %v311 = vld [vmem:[%s310] sm:$0xff]
        %vm312 = vcmask 31744
        %v314 = vsel %vm312, %v311, 0
        %vm316 = vcmask 1043456
        %v317 = vsel %vm316, %v301, 0
        %319 = vmatpush.msra.mxu0 0.0
        %320 = vmatpush.msra.mxu0 0.0
        %321 = vmatpush.msra.mxu0 0.0
        %322 = vmatpush.msra.mxu0 0.0
        %323 = vmatpush.msra.mxu0 0.0
        %324 = vmatpush.msra.mxu0 0.0
        %325 = vmatpush.msra.mxu0 0.0
        %326 = vmatpush.msra.mxu0 0.0
        %327 = vmatpush.msra.mxu0 0.0
        %328 = vmatpush.msra.mxu0 0.0
        %329 = vmatpush.msra.mxu0 0.0
        %330 = vmatpush.msra.mxu0 0.0
        %331 = vmatpush.msra.mxu0 0.0
        %332 = vmatpush.msra.mxu0 0.0
        %333 = vmatpush.msra.mxu0 0.0
        %334 = vmatpush.msra.mxu0 %v317
        %335 = vmatmul.f32.gmra.mxu0 %v314
        %v336 = vpop.f32.mrf.mxu0
        %v337 = vadd.f32 0.0, %v336
        %338 = vdwg.mxu0
        %v340 = vsel %vm312, %v309, 0
        %v343 = vsel %vm316, %v308, 0
        %345 = vmatpush.msra.mxu0 0.0
        %346 = vmatpush.msra.mxu0 0.0
        %347 = vmatpush.msra.mxu0 0.0
        %348 = vmatpush.msra.mxu0 0.0
        %349 = vmatpush.msra.mxu0 0.0
        %350 = vmatpush.msra.mxu0 0.0
        %351 = vmatpush.msra.mxu0 0.0
        %352 = vmatpush.msra.mxu0 0.0
        %353 = vmatpush.msra.mxu0 0.0
        %354 = vmatpush.msra.mxu0 0.0
        %355 = vmatpush.msra.mxu0 0.0
        %356 = vmatpush.msra.mxu0 0.0
        %357 = vmatpush.msra.mxu0 0.0
        %358 = vmatpush.msra.mxu0 0.0
        %359 = vmatpush.msra.mxu0 0.0
        %360 = vmatpush.msra.mxu0 %v343
        %361 = vmatmul.f32.gmra.mxu0 %v340
        %v362 = vpop.f32.mrf.mxu0
        %v363 = vadd.f32 %v337, %v362
        %364 = vdwg.mxu0
        %365 = vrot.lane.b32.xlu0 %v301, 127
        %v366 = vpop.permute.xlu0 %365
        %369 = vrot.lane.b32.xlu0 %v302, 14
        %v370 = vpop.permute.xlu0 %369
        %vm372 = vcmask 121856
        %v373 = vsel %vm372, %v366, %v370
        %s374 = scalar_lea.vmem %s2, 16
        %v375 = vld [vmem:[%s374] sm:$0xff]
        %v377 = vsel %vm312, %v375, 0
        %v380 = vsel %vm316, %v373, 0
        %382 = vmatpush.msra.mxu0 0.0
        %383 = vmatpush.msra.mxu0 0.0
        %384 = vmatpush.msra.mxu0 0.0
        %385 = vmatpush.msra.mxu0 0.0
        %386 = vmatpush.msra.mxu0 0.0
        %387 = vmatpush.msra.mxu0 0.0
        %388 = vmatpush.msra.mxu0 0.0
        %389 = vmatpush.msra.mxu0 0.0
        %390 = vmatpush.msra.mxu0 0.0
        %391 = vmatpush.msra.mxu0 0.0
        %392 = vmatpush.msra.mxu0 0.0
        %393 = vmatpush.msra.mxu0 0.0
        %394 = vmatpush.msra.mxu0 0.0
        %395 = vmatpush.msra.mxu0 0.0
        %396 = vmatpush.msra.mxu0 0.0
        %397 = vmatpush.msra.mxu0 %v380
        %398 = vmatmul.f32.gmra.mxu0 %v377
        %v399 = vpop.f32.mrf.mxu0
        %v400 = vadd.f32 0.0, %v399
        %401 = vdwg.mxu0
        %v402 = vadd.f32 %v363, %v400
        %v403 = vld [vmem:[%s3] sm:$0xff]
        %405 = vset.pattern.permute.xlu0 0
        %406 = vperm.xlu0 %405, %v403
        %v407 = vpop.permute.xlu0 %406
        %v409 = vadd.f32 %v402, %v407
        %v410 = vld [vmem:[%s300] sm:$0xf]
        %vm411 = vcmp.ne.s32.totalorder %v410, 0
        %v413 = vrot.slane %v409, 4
        %v415 = vsel %vm411, 1, 0
        %vm416 = vcmp.eq.s32.totalorder %v415, 1
        %v417 = vsel %vm416, %v409, 0.0
        %v418 = vsel %vm416, %v413, 0.0
        %421 = vst [vmem:[#allocation1] ss:$2 sm:$0xff] %v417
        %s422 = scalar_lea.vmem [#allocation1], 1
        %423 = vst [vmem:[%s422] ss:$2 sm:$0xff] %v418
        %v424 = vld.sshfl [vmem:[#allocation1] sm:$0xff pattern:$0x75316420]
        %vm426 = vcmask 130048
        %427 = vst.msk [vmem:[%s279] sm:$0xff] %vm426, %v424
        %s428 = sand.u32 %s167, 1
        %s429 = scalar_lea.sflag [#allocation3], %s428
        %s430 = sand.u32 %s167, 1
        %s431 = smul.addr %s430, 8
        %s432 = scalar_lea.vmem [#allocation2], %s431
        // Predicated region
        $region41: #{tpu_custom_call.1} parent=39 // pred_check
          %p433 = pneg %p177
        $region42: #{tpu_custom_call.1} parent=39 // pred_check_branch
          %435 = sbr.rel (%p433) target = $region44
        $region43: #{tpu_custom_call.1} parent=39 // pred_region
          %437 = vsyncadd %s429, 0
          %s438 = sadd.s32 %s24, %s23
          %s439 = smul.addr %s438, 8
          %s440 = scalar_lea.hbm %s5, %s439
          %s442 = sshll.u32 %s432, 4
          %s443 = int_to_ptr.vmem [resolvable:$true] %s442
          %s444 = sshll.u32 %s440, 4
          %s445 = int_to_ptr.hbm [resolvable:$true] %s444
          %447 = dma.vmem_to_hbm [thread:$0]  %s443, 128, %s445, %s429
        $region44: #{tpu_custom_call.1} parent=39 // pred_fallthru
          _
      $region40: #{tpu_custom_call.1} parent=5 // pred_fallthru
        _
      %p448 = scmp.le.s32.totalorder 2, %s14
      // Predicated region
      $region45: #{tpu_custom_call.1} parent=5 // pred_check
        %p449 = pneg %p448
      $region46: #{tpu_custom_call.1} parent=5 // pred_check_branch
        %451 = sbr.rel (%p449) target = $region48
      $region47: #{tpu_custom_call.1} parent=5 // pred_region
        %s452 = ssub.s32 %s14, 2
        // Predicated region
        $region49: #{tpu_custom_call.1} parent=47 // pred_check
          %p453 = pneg %p183
        $region50: #{tpu_custom_call.1} parent=47 // pred_check_branch
          %455 = sbr.rel (%p453) target = $region52
        $region51: #{tpu_custom_call.1} parent=47 // pred_region
          %s456 = sand.u32 %s168, 1
          %s457 = scalar_lea.sflag [#allocation3], %s456
          %s458 = sand.u32 %s168, 1
          %s459 = smul.addr %s458, 8
          %s460 = scalar_lea.vmem [#allocation2], %s459
          %462 = dma.done %s457, 128
        $region52: #{tpu_custom_call.1} parent=47 // pred_fallthru
          _
      $region48: #{tpu_custom_call.1} parent=5 // pred_fallthru
        _
    $region6: #{tpu_custom_call.1} parent=1 // loop_footer
      %s18 = sadd.s32 1, %s14
    $region7: #{tpu_custom_call.1} parent=1 // loop_footer_branch
      %13 = sbr.rel target = $region3
    $region8: #{tpu_custom_call.1} parent=1 // loop_exit
      _
    %463 = vsyncpa [#allocation3], 1
    %s464 = scalar_lea.sflag [#allocation3], 1
    %465 = vsyncpa %s464, 1

</llo_original>
